<compile_context>
chip_gen: v5e
topology: v5e:2x2
jax: 0.10.0
libtpu: 0.0.40
codegen_flags: <defaults>
</compile_context>

<pallas_src>
import math

import jax
import jax.numpy as jnp
from jax.experimental import pallas as pl
from jax.experimental.pallas import tpu as pltpu

LANE = 128


# ------------------------------ small helpers ------------------------------ #
def _ru(x, m):
    return (x + m - 1) // m * m


def _pad_last(a, n):
    if a.shape[-1] == n:
        return a
    cfg = [(0, 0)] * (a.ndim - 1) + [(0, n - a.shape[-1])]
    return jnp.pad(a, cfg)


def _pick_th(ho, wo8, footprint, budget, target_rows=1024):
    """Row-tile height: ~target_rows matmul rows, multiple of 8, shrunk to the
    VMEM budget and balanced across tiles."""
    th = max(8, (target_rows // max(wo8, 1)) // 8 * 8)
    th = min(th, _ru(ho, 8))
    while th > 8 and footprint(th) > budget:
        th -= 8
    nt = -(-ho // th)
    th = _ru(-(-ho // nt), 8)
    nt = -(-ho // th)
    return th, nt


# ------------------------------ Pallas kernel ------------------------------ #
def _make_conv_kernel(kh, th, wo, fused):
    """Stride-1 conv on a (th, wo) output tile: kh MXU dots of K = kw*cin
    (the kw taps live in the contraction dim) + optional fused 1x1 epilogue."""

    def kernel(x_ref, w_ref, b_ref, *rest):
        if fused:
            fw_ref, fb_ref, o_ref = rest
        else:
            (o_ref,) = rest
        kcin = x_ref.shape[-1]

        def tap_dot(i):
            win = x_ref[pl.ds(i, th), :, :]        # leading-dim shift: free addressing
            return jnp.dot(win.reshape(th * wo, kcin), w_ref[i],
                           preferred_element_type=jnp.float32)

        acc = tap_dot(0)
        for i in range(1, kh):
            acc = acc + tap_dot(i)
        acc = acc + b_ref[...]                     # f32 bias epilogue
        if fused:                                  # fused trailing 1x1 matmul
            acc = jnp.dot(acc.astype(jnp.bfloat16), fw_ref[...],
                          preferred_element_type=jnp.float32) + fb_ref[...]
        o_ref[...] = acc.reshape(th, wo, acc.shape[-1]).astype(o_ref.dtype)

    return kernel


def conv_taps(x, taps, bias, *, kh, kw, pad_h, pad_w,
              post_w=None, post_b=None, out_dtype=jnp.bfloat16):
    """Stride-1 conv of zero-padded NHWC `x` with per-tap (Cin, Cout) weights.

    x:      (N, H, W, Cin)
    taps:   (kh*kw, Cin, Cout), row-major over the (kh, kw) window
    bias:   (Cout,)
    post_w: optional fused trailing 1x1 matmul, (Cout, C2) / (C2,)
    Returns (N, Ho, Wo, Cout or C2) in out_dtype.
    """
    n, h, w, cin = x.shape
    t, cin_w, c1 = taps.shape
    assert t == kh * kw and cin_w == cin
    ho = h + 2 * pad_h - kh + 1
    wo = w + 2 * pad_w - kw + 1
    wo8 = _ru(wo, 8)
    kcin = kw * cin
    c1p = _ru(c1, LANE)

    fused = post_w is not None
    if fused:
        assert post_w.shape[0] == c1
        c2 = post_w.shape[1]
        c_out, cop = c2, _ru(c2, LANE)
    else:
        c_out, cop = c1, c1p
    out_bytes = jnp.dtype(out_dtype).itemsize

    def footprint(th):                     # double-buffered VMEM per grid step
        in_blk = (th + kh - 1) * wo8 * kcin * 2
        out_blk = th * wo8 * cop * out_bytes
        wts = kh * kcin * c1p * 2 + 4 * c1p
        if fused:
            wts += c1p * cop * 2 + 4 * cop
        live = th * wo8 * (4 * max(c1p, cop) + 2 * c1p)   # f32 acc + bf16 copy
        return 2 * (in_blk + out_blk) + wts + live

    th, nt = _pick_th(ho, wo8, footprint, budget=12 << 20)

    hp = nt * th + kh - 1                  # padded rows cover the last tile's halo
    wp = wo8 + kw - 1
    xpad = jnp.pad(x.astype(jnp.bfloat16),
                   ((0, 0), (pad_h, hp - h - pad_h), (pad_w, wp - w - pad_w), (0, 0)))
    # Partial im2col along W: kw column-shifted copies concatenated on channels.
    if kw == 1:
        xsh = xpad
    else:
        xsh = jnp.concatenate([xpad[:, :, j:j + wo8, :] for j in range(kw)], axis=-1)
    # Halo'd row strips: the row-tile grid axis indexes the input block directly.
    strips = jnp.stack([xsh[:, r * th:r * th + th + kh - 1] for r in range(nt)],
                       axis=1).reshape(n * nt, th + kh - 1, wo8, kcin)

    # Weights: (kh, kw*cin, c1p) -- the kw taps are concatenated on the K dim.
    w_rows = [jnp.concatenate([taps[i * kw + j] for j in range(kw)], axis=0)
              for i in range(kh)]
    w_in = _pad_last(jnp.stack(w_rows, axis=0), c1p).astype(jnp.bfloat16)
    b_in = _pad_last(bias.astype(jnp.float32), c1p).reshape(1, c1p)

    extra_in, extra_specs = [], []
    if fused:
        fw_in = jnp.pad(post_w.astype(jnp.bfloat16), ((0, c1p - c1), (0, cop - c2)))
        fb_in = _pad_last(post_b.astype(jnp.float32), cop).reshape(1, cop)
        extra_in = [fw_in, fb_in]
        extra_specs = [pl.BlockSpec((c1p, cop), lambda i, j: (0, 0)),
                       pl.BlockSpec((1, cop), lambda i, j: (0, 0))]

    vmem_limit = int(min(max(3 * footprint(th), 16 << 20), 40 << 20))

    out = pl.pallas_call(
        _make_conv_kernel(kh, th, wo8, fused),
        out_shape=jax.ShapeDtypeStruct((n, nt * th, wo8, cop), out_dtype),
        grid=(n, nt),
        in_specs=[pl.BlockSpec((None, th + kh - 1, wo8, kcin),
                               lambda i, j: (i * nt + j, 0, 0, 0)),
                  pl.BlockSpec((kh, kcin, c1p), lambda i, j: (0, 0, 0)),
                  pl.BlockSpec((1, c1p), lambda i, j: (0, 0))] + extra_specs,
        out_specs=pl.BlockSpec((None, th, wo8, cop), lambda i, j: (i, j, 0, 0)),
        compiler_params=pltpu.CompilerParams(
            dimension_semantics=("parallel", "parallel"),
            vmem_limit_bytes=vmem_limit),
    )(strips, w_in, b_in, *extra_in)
    return out[:, :ho, :wo, :c_out]


# --------------------------- conv building blocks -------------------------- #
def conv2d(x, w_oihw, b, padding=0, post_w=None, post_b=None,
           out_dtype=jnp.bfloat16):
    """nn.Conv2d (stride=1) on NHWC input with PyTorch OIHW weights."""
    cout, cin, kh, kw = w_oihw.shape
    taps = jnp.transpose(w_oihw, (2, 3, 1, 0)).reshape(kh * kw, cin, cout)
    return conv_taps(x, taps, b, kh=kh, kw=kw, pad_h=padding, pad_w=padding,
                     post_w=post_w, post_b=post_b, out_dtype=out_dtype)


def conv_transpose2d_k3s2(x, w_iohw, b, post_w=None, post_b=None,
                          out_dtype=jnp.bfloat16):
    """nn.ConvTranspose2d(k=3, s=2, p=0) as ONE pallas_call: the 4 sub-pixel
    phases become a stride-1 2x2 conv (pad 1) with phases stacked along Cout,
    followed by a reshape/transpose depth-to-space (no stride-2 scatters).
    An optional trailing 1x1 conv is fused per-phase via a block-diagonal
    epilogue weight."""
    cin, cout, kh, kw = w_iohw.shape
    assert (kh, kw) == (3, 3)
    n, h, w, _ = x.shape
    z = jnp.zeros((cin, cout), w_iohw.dtype)

    def W(a, c):
        return w_iohw[:, :, a, c]

    # 2x2 window taps, row-major (di, dj); phase order along Cout: [ee, eo, oe, oo].
    taps = jnp.stack([
        jnp.concatenate([W(2, 2), z,       z,       z      ], axis=1),   # (0, 0)
        jnp.concatenate([W(2, 0), W(2, 1), z,       z      ], axis=1),   # (0, 1)
        jnp.concatenate([W(0, 2), z,       W(1, 2), z      ], axis=1),   # (1, 0)
        jnp.concatenate([W(0, 0), W(0, 1), W(1, 0), W(1, 1)], axis=1),   # (1, 1)
    ], axis=0)                                               # (4, cin, 4*cout)
    b4 = jnp.tile(b, 4)

    c2 = cout
    pw = pb = None
    if post_w is not None:
        c2 = post_w.shape[1]
        pw = jnp.kron(jnp.eye(4, dtype=post_w.dtype), post_w)  # block-diag (4*cout, 4*c2)
        pb = jnp.tile(post_b, 4)

    y = conv_taps(x, taps, b4, kh=2, kw=2, pad_h=1, pad_w=1,
                  post_w=pw, post_b=pb, out_dtype=out_dtype)   # (N, H+1, W+1, 4*c2)
    # depth-to-space: phase (rh, rw) -> out[2a+rh, 2b+rw]
    y = y.reshape(n, h + 1, w + 1, 2, 2, c2)
    y = jnp.transpose(y, (0, 1, 3, 2, 4, 5)).reshape(n, 2 * h + 2, 2 * w + 2, c2)
    return y[:, :2 * h + 1, :2 * w + 1, :]


def conv3x3_with_upsample2_head(x, w_conv, b_conv, w_t2, b_t2,
                                out_dtype=jnp.float32):
    """conv2 (3x3, pad=1) with the ConvTranspose2d(k=2, s=2) fused as a stacked
    1x1 epilogue (4 sub-pixel phases along Cout), then one depth-to-space."""
    cout_c, cin_c, kh, kw = w_conv.shape
    cin_t, nc, kt0, kt1 = w_t2.shape
    assert (kt0, kt1) == (2, 2) and cin_t == cout_c
    n, h, w, _ = x.shape
    pw = jnp.concatenate([w_t2[:, :, rh, rw] for rh in range(2) for rw in range(2)],
                         axis=1)                              # (cout_c, 4*nc)
    pb = jnp.tile(b_t2, 4)
    y = conv2d(x, w_conv, b_conv, padding=kh // 2,
               post_w=pw, post_b=pb, out_dtype=out_dtype)      # (N, H, W, 4*nc)
    y = y.reshape(n, h, w, 2, 2, nc)
    y = jnp.transpose(y, (0, 1, 3, 2, 4, 5)).reshape(n, 2 * h, 2 * w, nc)
    return y


# ------------------------------- LinkNet ----------------------------------- #
def decoder_block(x, p):
    w1, b1 = p["conv1"]                      # 1x1: m -> m//4
    x = conv2d(x, w1, b1, padding=0)
    wu, bu = p["upconv2"]                    # 3x3, stride 2: m//4 -> m//4
    w2, b2 = p["conv2"]                      # 1x1: m//4 -> n  (fused as epilogue)
    post_w = jnp.transpose(w2[:, :, 0, 0])   # (m//4, n)
    return conv_transpose2d_k3s2(x, wu, bu, post_w=post_w, post_b=b2)


def linknet_forward(x_nchw, params):
    # TODO(synk): LinkNet.forward is `pass` in the reference and its pretrained
    # ResNet50 encoder cannot be reproduced in-script; we implement the fully
    # specified compute (DecoderBlock + head) as the canonical LinkNet decoder
    # cascade: decoder4 -> decoder3 -> decoder2 -> decoder1 -> full_conv1 ->
    # conv2 -> full_conv2.
    x = jnp.transpose(x_nchw, (0, 2, 3, 1)).astype(jnp.bfloat16)  # NCHW -> NHWC
    x = decoder_block(x, params["decoder4"])   # 512 -> 256
    x = decoder_block(x, params["decoder3"])   # 256 -> 128
    x = decoder_block(x, params["decoder2"])   # 128 -> 64
    x = decoder_block(x, params["decoder1"])   # 64  -> 64
    w, b = params["full_conv1"]
    x = conv_transpose2d_k3s2(x, w, b)         # 64 -> 32
    wc, bc = params["conv2"]
    wt, bt = params["full_conv2"]
    x = conv3x3_with_upsample2_head(x, wc, bc, wt, bt,
                                    out_dtype=jnp.float32)     # 32 -> num_classes
    return jnp.transpose(x, (0, 3, 1, 2))      # NHWC -> NCHW


# ------------------------------- parameters -------------------------------- #
def _conv_params(key, cout, cin, k):
    kw_, kb = jax.random.split(key)
    fan_in = cin * k * k
    w = jax.random.normal(kw_, (cout, cin, k, k), jnp.float32) / math.sqrt(fan_in)
    b = jax.random.normal(kb, (cout,), jnp.float32) * 0.01
    return w, b


def _convt_params(key, cin, cout, k):
    kw_, kb = jax.random.split(key)
    fan_in = cin * k * k
    w = jax.random.normal(kw_, (cin, cout, k, k), jnp.float32) / math.sqrt(fan_in)
    b = jax.random.normal(kb, (cout,), jnp.float32) * 0.01
    return w, b


def init_linknet_params(key, num_classes):
    keys = jax.random.split(key, 7)
    params = {}
    for idx, (name, m, n) in enumerate(
        [("decoder1", 64, 64), ("decoder2", 128, 64),
         ("decoder3", 256, 128), ("decoder4", 512, 256)]
    ):
        k1, k2, k3 = jax.random.split(keys[idx], 3)
        params[name] = {
            "conv1": _conv_params(k1, m // 4, m, 1),
            "upconv2": _convt_params(k2, m // 4, m // 4, 3),
            "conv2": _conv_params(k3, n, m // 4, 1),
        }
    params["full_conv1"] = _convt_params(keys[4], 64, 32, 3)
    params["conv2"] = _conv_params(keys[5], 32, 32, 3)
    params["full_conv2"] = _convt_params(keys[6], 32, num_classes, 2)
    return params


# ---------------------------------- main ----------------------------------- #
if __name__ == "__main__":
    num_classes = 3
    root = jax.random.PRNGKey(0)
    (k_x, k_p, k_a, k_b, k_c, k_d, k_e, k_f,
     k_g, k_h, k_i, k_j) = jax.random.split(root, 12)

    def bf(a):
        return a.astype(jnp.bfloat16).astype(jnp.float32)

    def _conv_ref(v, w_oihw, bias, pad):
        return jax.lax.conv_general_dilated(
            v, jnp.transpose(bf(w_oihw), (2, 3, 1, 0)), (1, 1),
            ((pad, pad), (pad, pad)),
            dimension_numbers=("NHWC", "HWIO", "NHWC")) + bias

    def _deconv_ref(v, w_iohw, bias, pad):
        return jax.lax.conv_general_dilated(
            v, jnp.transpose(jnp.flip(bf(w_iohw), (2, 3)), (2, 3, 0, 1)),
            (1, 1), ((pad, pad), (pad, pad)), lhs_dilation=(2, 2),
            dimension_numbers=("NHWC", "HWIO", "NHWC")) + bias

    # -- sanity 1: K-concat (im2col-along-W) conv vs lax (same bf16 operands) --
    xt = jax.random.normal(k_a, (2, 7, 9, 5), jnp.float32)
    wt = jax.random.normal(k_b, (6, 5, 3, 3), jnp.float32)
    bt = jax.random.normal(k_c, (6,), jnp.float32) * 0.1
    ours = conv2d(xt, wt, bt, padding=1, out_dtype=jnp.float32)
    ref = _conv_ref(bf(xt), wt, bt, 1)
    assert jnp.allclose(ours, ref, atol=1e-2, rtol=1e-2), "conv2d mismatch vs lax"

    # -- sanity 2: phase-stacked ConvTranspose2d(k=3, s=2) vs lax --
    wt2 = jax.random.normal(k_d, (5, 6, 3, 3), jnp.float32) * 0.2
    ours_t = conv_transpose2d_k3s2(xt, wt2, bt, out_dtype=jnp.float32)
    ref_t = _deconv_ref(bf(xt), wt2, bt, 2)
    assert ours_t.shape == ref_t.shape, (ours_t.shape, ref_t.shape)
    assert jnp.allclose(ours_t, ref_t, atol=1e-2, rtol=1e-2), "deconv k3s2 mismatch"

    # -- sanity 3: fully fused DecoderBlock (block-diag epilogue) vs lax chain --
    m, n_out = 8, 12
    kd1, kd2, kd3 = jax.random.split(k_e, 3)
    p_blk = {"conv1": _conv_params(kd1, m // 4, m, 1),
             "upconv2": _convt_params(kd2, m // 4, m // 4, 3),
             "conv2": _conv_params(kd3, n_out, m // 4, 1)}
    xb = jax.random.normal(k_f, (2, 3, 5, m), jnp.float32)
    ours_b = decoder_block(xb, p_blk).astype(jnp.float32)
    rb = _conv_ref(bf(xb), *p_blk["conv1"], 0)
    rb = _deconv_ref(bf(rb), *p_blk["upconv2"], 2)
    rb = _conv_ref(bf(rb), *p_blk["conv2"], 0)
    assert ours_b.shape == rb.shape, (ours_b.shape, rb.shape)
    assert jnp.allclose(ours_b, rb, atol=5e-2, rtol=5e-2), "decoder block mismatch"

    # -- sanity 4: fused head (3x3 conv + k=2,s=2 deconv epilogue) vs lax chain --
    xh = jax.random.normal(k_g, (2, 5, 7, 6), jnp.float32)
    wh = jax.random.normal(k_h, (8, 6, 3, 3), jnp.float32) * 0.2
    bh = jax.random.normal(k_i, (8,), jnp.float32) * 0.1
    wu2 = jax.random.normal(k_j, (8, 4, 2, 2), jnp.float32) * 0.3
    bu2 = jnp.arange(4, dtype=jnp.float32) * 0.05
    ours_h = conv3x3_with_upsample2_head(xh, wh, bh, wu2, bu2,
                                         out_dtype=jnp.float32)
    rh = _conv_ref(bf(xh), wh, bh, 1)
    rh = _deconv_ref(bf(rh), wu2, bu2, 1)
    assert ours_h.shape == rh.shape, (ours_h.shape, rh.shape)
    assert jnp.allclose(ours_h, rh, atol=5e-2, rtol=5e-2), "fused head mismatch"

    # -- LinkNet decoder-path input: feature map with 512 channels (decoder4) --
    x = jax.random.normal(k_x, (2, 512, 2, 2), jnp.float32)
    params = init_linknet_params(k_p, num_classes)

    fwd = jax.jit(linknet_forward)
    out = jax.block_until_ready(fwd(x, params))

    # spatial chain: 2 -> 5 -> 11 -> 23 -> 47 -> 95 -> 95 -> 190
    assert out.shape == (2, num_classes, 190, 190), out.shape
    assert bool(jnp.all(jnp.isfinite(out)))
    print("KERNEL_OK")
</pallas_src>

<mosaic_0001>
module attributes {stable_mosaic.version = 11 : i64} {
  func.func @kernel(%arg0: i32, %arg1: i32, %arg2: memref<1x10x16x15xbf16, #tpu.memory_space<vmem>>, %arg3: memref<3x15x128xbf16, #tpu.memory_space<vmem>>, %arg4: memref<1x128xf32, #tpu.memory_space<vmem>>, %arg5: memref<1x8x16x128xf32, #tpu.memory_space<vmem>>) attributes {dimension_semantics = [#tpu.dimension_semantics<parallel>, #tpu.dimension_semantics<parallel>], iteration_bounds = array<i64: 2, 1>, scalar_prefetch = 0 : i64, scratch_operands = 0 : i64, tpu.core_type = #tpu.core_type<tc>, window_params = [{transform_indices = @transform_0, window_bounds = array<i64: 1, 10, 16, 15>}, {pipeline_mode = #tpu.pipeline_mode<synchronous>, transform_indices = @transform_1, window_bounds = array<i64: 3, 15, 128>}, {pipeline_mode = #tpu.pipeline_mode<synchronous>, transform_indices = @transform_2, window_bounds = array<i64: 1, 128>}, {transform_indices = @transform_3, window_bounds = array<i64: 1, 8, 16, 128>}]} {
    %c0 = arith.constant 0 : index
    %c0_0 = arith.constant 0 : index
    %c0_1 = arith.constant 0 : index
    %c0_2 = arith.constant 0 : index
    %0 = vector.load %arg2[%c0, %c0_0, %c0_1, %c0_2] : memref<1x10x16x15xbf16, #tpu.memory_space<vmem>>, vector<1x8x16x15xbf16>
    %1 = vector.shape_cast %0 : vector<1x8x16x15xbf16> to vector<8x16x15xbf16>
    %2 = vector.shape_cast %1 : vector<8x16x15xbf16> to vector<128x15xbf16>
    %c0_3 = arith.constant 0 : index
    %c0_4 = arith.constant 0 : index
    %c0_5 = arith.constant 0 : index
    %3 = vector.load %arg3[%c0_3, %c0_4, %c0_5] : memref<3x15x128xbf16, #tpu.memory_space<vmem>>, vector<1x15x128xbf16>
    %4 = vector.shape_cast %3 : vector<1x15x128xbf16> to vector<15x128xbf16>
    %cst = arith.constant dense<0.000000e+00> : vector<128x128xf32>
    %5 = tpu.matmul %2, %4, %cst {dimension_numbers = #tpu.dot_dimension_numbers<[1], [0], [0], [1], [0, 0, 1, 1], [], []>} : vector<128x15xbf16>, vector<15x128xbf16>, vector<128x128xf32> -> vector<128x128xf32>
    %c0_6 = arith.constant 0 : index
    %c1 = arith.constant 1 : index
    %c0_7 = arith.constant 0 : index
    %c0_8 = arith.constant 0 : index
    %6 = vector.load %arg2[%c0_6, %c1, %c0_7, %c0_8] : memref<1x10x16x15xbf16, #tpu.memory_space<vmem>>, vector<1x8x16x15xbf16>
    %7 = vector.shape_cast %6 : vector<1x8x16x15xbf16> to vector<8x16x15xbf16>
    %8 = vector.shape_cast %7 : vector<8x16x15xbf16> to vector<128x15xbf16>
    %c1_9 = arith.constant 1 : index
    %c0_10 = arith.constant 0 : index
    %c0_11 = arith.constant 0 : index
    %9 = vector.load %arg3[%c1_9, %c0_10, %c0_11] : memref<3x15x128xbf16, #tpu.memory_space<vmem>>, vector<1x15x128xbf16>
    %10 = vector.shape_cast %9 : vector<1x15x128xbf16> to vector<15x128xbf16>
    %cst_12 = arith.constant dense<0.000000e+00> : vector<128x128xf32>
    %11 = tpu.matmul %8, %10, %cst_12 {dimension_numbers = #tpu.dot_dimension_numbers<[1], [0], [0], [1], [0, 0, 1, 1], [], []>} : vector<128x15xbf16>, vector<15x128xbf16>, vector<128x128xf32> -> vector<128x128xf32>
    %12 = arith.addf %5, %11 : vector<128x128xf32>
    %c0_13 = arith.constant 0 : index
    %c2 = arith.constant 2 : index
    %c0_14 = arith.constant 0 : index
    %c0_15 = arith.constant 0 : index
    %13 = vector.load %arg2[%c0_13, %c2, %c0_14, %c0_15] : memref<1x10x16x15xbf16, #tpu.memory_space<vmem>>, vector<1x8x16x15xbf16>
    %14 = vector.shape_cast %13 : vector<1x8x16x15xbf16> to vector<8x16x15xbf16>
    %15 = vector.shape_cast %14 : vector<8x16x15xbf16> to vector<128x15xbf16>
    %c2_16 = arith.constant 2 : index
    %c0_17 = arith.constant 0 : index
    %c0_18 = arith.constant 0 : index
    %16 = vector.load %arg3[%c2_16, %c0_17, %c0_18] : memref<3x15x128xbf16, #tpu.memory_space<vmem>>, vector<1x15x128xbf16>
    %17 = vector.shape_cast %16 : vector<1x15x128xbf16> to vector<15x128xbf16>
    %cst_19 = arith.constant dense<0.000000e+00> : vector<128x128xf32>
    %18 = tpu.matmul %15, %17, %cst_19 {dimension_numbers = #tpu.dot_dimension_numbers<[1], [0], [0], [1], [0, 0, 1, 1], [], []>} : vector<128x15xbf16>, vector<15x128xbf16>, vector<128x128xf32> -> vector<128x128xf32>
    %19 = arith.addf %12, %18 : vector<128x128xf32>
    %c0_20 = arith.constant 0 : index
    %c0_21 = arith.constant 0 : index
    %20 = vector.load %arg4[%c0_20, %c0_21] : memref<1x128xf32, #tpu.memory_space<vmem>>, vector<1x128xf32>
    %21 = vector.broadcast %20 : vector<1x128xf32> to vector<128x128xf32>
    %22 = arith.addf %19, %21 : vector<128x128xf32>
    %23 = vector.shape_cast %22 : vector<128x128xf32> to vector<8x16x128xf32>
    %c0_22 = arith.constant 0 : index
    %c0_23 = arith.constant 0 : index
    %c0_24 = arith.constant 0 : index
    %c0_25 = arith.constant 0 : index
    %24 = vector.load %arg5[%c0_22, %c0_23, %c0_24, %c0_25] : memref<1x8x16x128xf32, #tpu.memory_space<vmem>>, vector<1x8x16x128xf32>
    %25 = vector.shape_cast %24 : vector<1x8x16x128xf32> to vector<8x16x128xf32>
    %26 = vector.shape_cast %23 : vector<8x16x128xf32> to vector<1x8x16x128xf32>
    tpu.vector_store %arg5[%c0_22, %c0_23, %c0_24, %c0_25], %26 {strides = array<i32>} : memref<1x8x16x128xf32, #tpu.memory_space<vmem>>, vector<1x8x16x128xf32>,
    return
  }
  func.func @transform_0(%arg0: i32, %arg1: i32) -> (i32, i32, i32, i32) {
    %c1_i32 = arith.constant 1 : i32
    %0 = arith.muli %arg0, %c1_i32 : i32
    %1 = arith.addi %0, %arg1 : i32
    %c0_i32 = arith.constant 0 : i32
    %c0_i32_0 = arith.constant 0 : i32
    %c0_i32_1 = arith.constant 0 : i32
    %c0_i32_2 = arith.constant 0 : i32
    return %1, %c0_i32, %c0_i32_0, %c0_i32_1 : i32, i32, i32, i32
  }
  func.func @transform_1(%arg0: i32, %arg1: i32) -> (i32, i32, i32) {
    %c0_i32 = arith.constant 0 : i32
    %c0_i32_0 = arith.constant 0 : i32
    %c0_i32_1 = arith.constant 0 : i32
    %c0_i32_2 = arith.constant 0 : i32
    return %c0_i32, %c0_i32_0, %c0_i32_1 : i32, i32, i32
  }
  func.func @transform_2(%arg0: i32, %arg1: i32) -> (i32, i32) {
    %c0_i32 = arith.constant 0 : i32
    %c0_i32_0 = arith.constant 0 : i32
    %c0_i32_1 = arith.constant 0 : i32
    return %c0_i32, %c0_i32_0 : i32, i32
  }
  func.func @transform_3(%arg0: i32, %arg1: i32) -> (i32, i32, i32, i32) {
    %c0_i32 = arith.constant 0 : i32
    %c0_i32_0 = arith.constant 0 : i32
    %c0_i32_1 = arith.constant 0 : i32
    return %arg0, %arg1, %c0_i32, %c0_i32_0 : i32, i32, i32, i32
  }
}

</mosaic_0001>

<llo_original>
// kernel: tpu_custom_call.1
$region0: #{tpu_custom_call.1}
  #allocation0 [shape = 'u32[]', space=smem, size = 0x4, offset = 0x4, fixed_abs, tag = 'smem constant byte address 0x4 - core index']
  #allocation1 [shape = 'u32[72,128]{1,0:T(1,128)}', space=vmem, size = 0x9000, scoped, tag = 'internal scratch']
  %s0 = inlined_call_operand.vmem [shape: bf16[2,10,16,15], index: 0, kind: input, shape index: {}]
  %s1 = inlined_call_operand.vmem [shape: bf16[3,15,128], index: 1, kind: input, shape index: {}]
  %s2 = inlined_call_operand.vmem [shape: f32[1,128], index: 2, kind: input, shape index: {}]
  %s3 = inlined_call_operand.hbm [shape: f32[2,8,16,128], index: 3, kind: output, shape index: {}]
  %s4 = sld [smem:[#allocation0]]
  $region45: #{tpu_custom_call.1} parent=0
    _
  %s6 = ssub.s32 1, %s4
  %s7 = scalar_select 0, %s6, %s4
  $region1: #{tpu_custom_call.1} parent=0
    #allocation2 [shape = 'u8[131072]{0}', space=vmem, size = 0x20000, scoped, tag = 'output window, operand 0']
    #allocation3 [shape = 's32[2]{0}', space=sflag, size = 0x8, scoped, tag = 'scoped memory for tpu_custom_call.1']
    %8 = vsyncpa [#allocation3], 0
    %s9 = scalar_lea.sflag [#allocation3], 1
    %10 = vsyncpa %s9, 0
    loop: start=0, step=1, limit=4
    $region2: #{tpu_custom_call.1} parent=1 // loop_pre_header
      _
    $region3: #{tpu_custom_call.1} parent=1 // loop_header
      %s12 = sphi 0, %s16
      %p13 = scmp.ge.s32.totalorder %s12, 4
      %s19 = sphi 0, %s31
      %s20 = sphi 0, %s27
      %s21 = sphi 0, %s19
      %s22 = sphi 0, %s20
      %s23 = sphi 0, %s21
      %s24 = sphi 0, %s22
      %s36 = sphi 0, %s38
      %s39 = sphi 0, %s36
      %s40 = sphi 0, %s39
      %s56 = sphi 0, %s40
      %s60 = sphi 0, %s60
      %s62 = sphi 0, %s60
      %s63 = sphi 0, %s62
      %s77 = sphi 0, %s63
      %s81 = sphi 0, %s81
      %s83 = sphi 0, %s81
      %s84 = sphi 0, %s83
      %s98 = sphi 0, %s84
      %s106 = sphi 0, %s108
      %s109 = sphi 0, %s106
      %s110 = sphi 0, %s109
      %s126 = sphi 0, %s110
    $region4: #{tpu_custom_call.1} parent=1 // loop_header_branch
      %15 = sbr.rel (%p13) target = $region8
    $region5: #{tpu_custom_call.1} parent=1 // loop_body
      %s17 = ssub.s32 %s12, 1
      %s18 = ssub.s32 %s12, 2
      %s25 = sadd.s32 1, %s20
      %p26 = scmp.ge.s32.totalorder %s25, 1
      %s27 = scalar_select %p26, 0, %s25
      %s28 = sadd.s32 1, %s19
      %s29 = scalar_select %p26, %s28, %s19
      %p30 = scmp.ge.s32.totalorder %s29, 2
      %s31 = scalar_select %p30, 0, %s29
      %s32 = sadd.s32 %s19, %s20
      %s33 = sadd.s32 %s31, %s27
      %s34 = ssub.s32 %s32, %s33
      %p35 = scmp.eq.s32.totalorder %s34, 0
      %s37 = sadd.s32 %s36, 1
      %s38 = scalar_select %p35, %s36, %s37
      %p41 = pneg %p35
      %p42 = scmp.eq.s32.totalorder %s12, 1
      %p43 = por %p41, %p42
      %p44 = scmp.ne.s32.totalorder %s36, %s39
      %p45 = scmp.eq.s32.totalorder %s12, 0
      %p46 = por %p44, %p45
      %p47 = scmp.ne.s32.totalorder %s36, %s39
      %p48 = scmp.eq.s32.totalorder %s17, 1
      %p49 = por %p47, %p48
      %p50 = scmp.ne.s32.totalorder %s39, %s40
      %p51 = scmp.eq.s32.totalorder %s17, 0
      %p52 = por %p50, %p51
      %p53 = scmp.ne.s32.totalorder %s39, %s40
      %p54 = scmp.eq.s32.totalorder %s18, 1
      %p55 = por %p53, %p54
      %p57 = scmp.ne.s32.totalorder %s40, %s56
      %p58 = scmp.eq.s32.totalorder %s18, 0
      %p59 = por %p57, %p58
      %s61 = sadd.s32 %s60, 1
      %p64 = scmp.eq.s32.totalorder %s12, 1
      %p65 = scmp.ne.s32.totalorder %s60, %s62
      %p66 = scmp.eq.s32.totalorder %s12, 0
      %p67 = por %p65, %p66
      %p68 = scmp.ne.s32.totalorder %s60, %s62
      %p69 = scmp.eq.s32.totalorder %s17, 1
      %p70 = por %p68, %p69
      %p71 = scmp.ne.s32.totalorder %s62, %s63
      %p72 = scmp.eq.s32.totalorder %s17, 0
      %p73 = por %p71, %p72
      %p74 = scmp.ne.s32.totalorder %s62, %s63
      %p75 = scmp.eq.s32.totalorder %s18, 1
      %p76 = por %p74, %p75
      %p78 = scmp.ne.s32.totalorder %s63, %s77
      %p79 = scmp.eq.s32.totalorder %s18, 0
      %p80 = por %p78, %p79
      %s82 = sadd.s32 %s81, 1
      %p85 = scmp.eq.s32.totalorder %s12, 1
      %p86 = scmp.ne.s32.totalorder %s81, %s83
      %p87 = scmp.eq.s32.totalorder %s12, 0
      %p88 = por %p86, %p87
      %p89 = scmp.ne.s32.totalorder %s81, %s83
      %p90 = scmp.eq.s32.totalorder %s17, 1
      %p91 = por %p89, %p90
      %p92 = scmp.ne.s32.totalorder %s83, %s84
      %p93 = scmp.eq.s32.totalorder %s17, 0
      %p94 = por %p92, %p93
      %p95 = scmp.ne.s32.totalorder %s83, %s84
      %p96 = scmp.eq.s32.totalorder %s18, 1
      %p97 = por %p95, %p96
      %p99 = scmp.ne.s32.totalorder %s84, %s98
      %p100 = scmp.eq.s32.totalorder %s18, 0
      %p101 = por %p99, %p100
      %s102 = ssub.s32 %s19, %s31
      %s103 = ssub.s32 %s20, %s27
      %s104 = sor.u32 %s102, %s103
      %p105 = scmp.eq.s32.totalorder %s104, 0
      %s107 = sadd.s32 %s106, 1
      %s108 = scalar_select %p105, %s106, %s107
      %p111 = pneg %p105
      %p112 = scmp.eq.s32.totalorder %s12, 1
      %p113 = por %p111, %p112
      %p114 = scmp.ne.s32.totalorder %s106, %s109
      %p115 = scmp.eq.s32.totalorder %s12, 0
      %p116 = por %p114, %p115
      %p117 = scmp.ne.s32.totalorder %s106, %s109
      %p118 = scmp.eq.s32.totalorder %s17, 1
      %p119 = por %p117, %p118
      %p120 = scmp.ne.s32.totalorder %s109, %s110
      %p121 = scmp.eq.s32.totalorder %s17, 0
      %p122 = por %p120, %p121
      %p123 = scmp.ne.s32.totalorder %s109, %s110
      %p124 = scmp.eq.s32.totalorder %s18, 1
      %p125 = por %p123, %p124
      %p127 = scmp.ne.s32.totalorder %s110, %s126
      %p128 = scmp.eq.s32.totalorder %s18, 0
      %p129 = por %p127, %p128
      %p130 = scmp.le.s32.totalorder 1, %s12
      %p131 = scmp.lt.s32.totalorder %s12, 3
      %p132 = pnand %p130, %p131
      %p133 = pneg %p132
      // Predicated region
      $region9: #{tpu_custom_call.1} parent=5 // pred_check
        _
      $region10: #{tpu_custom_call.1} parent=5 // pred_check_branch
        %135 = sbr.rel (%p132) target = $region12
      $region11: #{tpu_custom_call.1} parent=5 // pred_region
        %s136 = ssub.s32 %s12, 1
        // Predicated region
        $region13: #{tpu_custom_call.1} parent=11 // pred_check
          %p137 = pneg %p73
        $region14: #{tpu_custom_call.1} parent=11 // pred_check_branch
          %139 = sbr.rel (%p137) target = $region16
        $region15: #{tpu_custom_call.1} parent=11 // pred_region
          _
        $region16: #{tpu_custom_call.1} parent=11 // pred_fallthru
          _
        // Predicated region
        $region17: #{tpu_custom_call.1} parent=11 // pred_check
          %p140 = pneg %p94
        $region18: #{tpu_custom_call.1} parent=11 // pred_check_branch
          %142 = sbr.rel (%p140) target = $region20
        $region19: #{tpu_custom_call.1} parent=11 // pred_region
          _
        $region20: #{tpu_custom_call.1} parent=11 // pred_fallthru
          _
      $region12: #{tpu_custom_call.1} parent=5 // pred_fallthru
        _
      %p143 = scmp.lt.s32.totalorder %s12, 2
      // Predicated region
      $region21: #{tpu_custom_call.1} parent=5 // pred_check
        %p144 = pneg %p143
      $region22: #{tpu_custom_call.1} parent=5 // pred_check_branch
        %146 = sbr.rel (%p144) target = $region24
      $region23: #{tpu_custom_call.1} parent=5 // pred_region
        // Predicated region
        $region25: #{tpu_custom_call.1} parent=23 // pred_check
          %p147 = pneg %p46
        $region26: #{tpu_custom_call.1} parent=23 // pred_check_branch
          %149 = sbr.rel (%p147) target = $region28
        $region27: #{tpu_custom_call.1} parent=23 // pred_region
          %s150 = sadd.s32 %s19, %s20
          %p151 = scmp.lt.s32.totalorder %s150, 1
          %s152 = scalar_select %p151, %s150, 1
          %s153 = smul.addr %s152, 20
          %s154 = smul.addr %s153, 4
          %s155 = scalar_lea.vmem %s0, %s154
          %s156 = sadd.s32 %s19, %s20
        $region28: #{tpu_custom_call.1} parent=23 // pred_fallthru
          _
      $region24: #{tpu_custom_call.1} parent=5 // pred_fallthru
        _
      %p157 = scmp.le.s32.totalorder 1, %s12
      %p158 = scmp.lt.s32.totalorder %s12, 3
      %p159 = pnand %p157, %p158
      %p160 = pneg %p159
      // Predicated region
      $region29: #{tpu_custom_call.1} parent=5 // pred_check
        _
      $region30: #{tpu_custom_call.1} parent=5 // pred_check_branch
        %162 = sbr.rel (%p159) target = $region32
      $region31: #{tpu_custom_call.1} parent=5 // pred_region
        %s163 = ssub.s32 %s12, 1
        %s164 = sadd.s32 %s21, %s22
        %p165 = scmp.lt.s32.totalorder %s164, 1
        %s166 = scalar_select %p165, %s164, 1
        %s167 = smul.addr %s166, 20
        %s168 = smul.addr %s167, 4
        %s169 = scalar_lea.vmem %s0, %s168
        %p170 = pneg %p52
        %p171 = pneg %p49
        %p172 = pneg %p73
        %p173 = pneg %p70
        %p174 = pneg %p94
        %p175 = pneg %p91
        %p176 = pneg %p122
        %p177 = pneg %p119
        %s178 = sand.u32 %s109, 1
        %s179 = scalar_lea.sflag [#allocation3], %s178
        %s180 = sand.u32 %s109, 1
        %s181 = smul.addr %s180, 128
        %s182 = scalar_lea.vmem [#allocation2], %s181
        %s183 = sadd.s32 %s21, %s22
        %p184 = scmp.lt.s32.totalorder %s183, 1
        %s185 = scalar_select %p184, %s183, 1
        %s186 = smul.addr %s185, 20
        %s187 = smul.addr %s186, 4
        %s188 = scalar_lea.vmem %s0, %s187
        %s189 = sadd.s32 %s21, %s22
        %s190 = smul.u32 8, %s22
        %v192 = vld [vmem:[%s188] sm:$0xf]
        %v193 = vld [vmem:[%s188 + $0x4] sm:$0xf]
        %v194 = vld [vmem:[%s188 + $0x8] sm:$0xf]
        %v195 = vld [vmem:[%s188 + $0xc] sm:$0xf]
        %v196 = vld [vmem:[%s188 + $0x10] sm:$0xf]
        %v197 = vld [vmem:[%s188 + $0x14] sm:$0xf]
        %v198 = vld [vmem:[%s188 + $0x18] sm:$0xf]
        %v199 = vld [vmem:[%s188 + $0x1c] sm:$0xf]
        %v200 = vld [vmem:[%s188 + $0x20] sm:$0xf]
        %v201 = vld [vmem:[%s188 + $0x24] sm:$0xf]
        %v202 = vld [vmem:[%s188 + $0x28] sm:$0xf]
        %v203 = vld [vmem:[%s188 + $0x2c] sm:$0xf]
        %v204 = vld [vmem:[%s188 + $0x30] sm:$0xf]
        %v205 = vld [vmem:[%s188 + $0x34] sm:$0xf]
        %v206 = vld [vmem:[%s188 + $0x38] sm:$0xf]
        %v207 = vld [vmem:[%s188 + $0x3c] sm:$0xf]
        %v208 = vld [vmem:[%s1] sm:$0xf]
        %v209 = vld [vmem:[%s1 + $0x4] sm:$0xf]
        %s210 = scalar_lea.vmem %s188, 8
        %v211 = vld [vmem:[%s210] sm:$0xf]
        %v212 = vld [vmem:[%s210 + $0x4] sm:$0xf]
        %v213 = vld [vmem:[%s210 + $0x8] sm:$0xf]
        %v214 = vld [vmem:[%s210 + $0xc] sm:$0xf]
        %v215 = vld [vmem:[%s210 + $0x10] sm:$0xf]
        %v216 = vld [vmem:[%s210 + $0x14] sm:$0xf]
        %v217 = vld [vmem:[%s210 + $0x18] sm:$0xf]
        %v218 = vld [vmem:[%s210 + $0x1c] sm:$0xf]
        %v219 = vld [vmem:[%s210 + $0x20] sm:$0xf]
        %v220 = vld [vmem:[%s210 + $0x24] sm:$0xf]
        %v221 = vld [vmem:[%s210 + $0x28] sm:$0xf]
        %v222 = vld [vmem:[%s210 + $0x2c] sm:$0xf]
        %v223 = vld [vmem:[%s210 + $0x30] sm:$0xf]
        %v224 = vld [vmem:[%s210 + $0x34] sm:$0xf]
        %v225 = vld [vmem:[%s210 + $0x38] sm:$0xf]
        %v226 = vld [vmem:[%s210 + $0x3c] sm:$0xf]
        %s227 = scalar_lea.vmem %s1, 8
        %v228 = vld [vmem:[%s227] sm:$0xf]
        %v229 = vld [vmem:[%s227 + $0x4] sm:$0xf]
        %v246 = vunpack.c.l.b16 %v211
        %v247 = vunpack.c.l.b16 %v212
        %v248 = vunpack.c.l.b16 %v213
        %v249 = vunpack.c.l.b16 %v214
        %v250 = vunpack.c.l.b16 %v215
        %v251 = vunpack.c.l.b16 %v216
        %v252 = vunpack.c.l.b16 %v217
        %v253 = vunpack.c.l.b16 %v218
        %v254 = vunpack.c.l.b16 %v219
        %v255 = vunpack.c.l.b16 %v220
        %v256 = vunpack.c.l.b16 %v221
        %v257 = vunpack.c.l.b16 %v222
        %v258 = vunpack.c.l.b16 %v223
        %v259 = vunpack.c.l.b16 %v224
        %v260 = vunpack.c.l.b16 %v225
        %v261 = vunpack.c.l.b16 %v226
        %v262 = vpack.c.b16 %v247, %v246
        %v263 = vpack.c.b16 %v249, %v248
        %v264 = vpack.c.b16 %v251, %v250
        %v265 = vpack.c.b16 %v253, %v252
        %v266 = vpack.c.b16 %v255, %v254
        %v267 = vpack.c.b16 %v257, %v256
        %v268 = vpack.c.b16 %v259, %v258
        %v269 = vpack.c.b16 %v261, %v260
        %v272 = vunpack.c.l.b16 %v228
        %v273 = vunpack.c.l.b16 %v229
        %v274 = vpack.c.b16 %v273, %v272
        %vm275 = vcmask 121856
        %v277 = vsel %vm275, %v262, 0
        %v280 = vsel %vm275, %v263, 0
        %v283 = vsel %vm275, %v264, 0
        %v286 = vsel %vm275, %v265, 0
        %v289 = vsel %vm275, %v266, 0
        %v292 = vsel %vm275, %v267, 0
        %v295 = vsel %vm275, %v268, 0
        %v298 = vsel %vm275, %v269, 0
        %vm300 = vcmask 1046528
        %vm301 = vcmask 1047552
        %v302 = vsel %vm300, 4294967295, 65535
        %v303 = vsel %vm301, %v302, 0
        %v305 = vand.u32 %v274, %v303
        %307 = vmatpush.bf16.msra.mxu0 0
        %308 = vmatpush.bf16.msra.mxu0 0
        %309 = vmatpush.bf16.msra.mxu0 0
        %310 = vmatpush.bf16.msra.mxu0 0
        %311 = vmatpush.bf16.msra.mxu0 0
        %312 = vmatpush.bf16.msra.mxu0 0
        %313 = vmatpush.bf16.msra.mxu0 0
        %314 = vmatpush.bf16.msra.mxu0 %v305
        %315 = vmatmul.bf16.gmra.mxu0 %v277
        %v316 = vpop.f32.mrf.mxu0
        %v317 = vadd.f32 0.0, %v316
        %v318 = vpop.f32.mrf.mxu0
        %v319 = vadd.f32 0.0, %v318
        %320 = vmatmul.bf16.gmra.mxu0 %v280
        %v321 = vpop.f32.mrf.mxu0
        %v322 = vadd.f32 0.0, %v321
        %v323 = vpop.f32.mrf.mxu0
        %v324 = vadd.f32 0.0, %v323
        %325 = vmatmul.bf16.gmra.mxu0 %v283
        %v326 = vpop.f32.mrf.mxu0
        %v327 = vadd.f32 0.0, %v326
        %v328 = vpop.f32.mrf.mxu0
        %v329 = vadd.f32 0.0, %v328
        %330 = vmatmul.bf16.gmra.mxu0 %v286
        %v331 = vpop.f32.mrf.mxu0
        %v332 = vadd.f32 0.0, %v331
        %v333 = vpop.f32.mrf.mxu0
        %v334 = vadd.f32 0.0, %v333
        %335 = vmatmul.bf16.gmra.mxu0 %v289
        %v336 = vpop.f32.mrf.mxu0
        %v337 = vadd.f32 0.0, %v336
        %v338 = vpop.f32.mrf.mxu0
        %v339 = vadd.f32 0.0, %v338
        %340 = vmatmul.bf16.gmra.mxu0 %v292
        %v341 = vpop.f32.mrf.mxu0
        %v342 = vadd.f32 0.0, %v341
        %v343 = vpop.f32.mrf.mxu0
        %v344 = vadd.f32 0.0, %v343
        %345 = vmatmul.bf16.gmra.mxu0 %v295
        %v346 = vpop.f32.mrf.mxu0
        %v347 = vadd.f32 0.0, %v346
        %v348 = vpop.f32.mrf.mxu0
        %v349 = vadd.f32 0.0, %v348
        %350 = vmatmul.bf16.gmra.mxu0 %v298
        %v351 = vpop.f32.mrf.mxu0
        %v352 = vadd.f32 0.0, %v351
        %v353 = vpop.f32.mrf.mxu0
        %v354 = vadd.f32 0.0, %v353
        %355 = vdwg.mxu0
        %v372 = vunpack.c.l.b16 %v192
        %v373 = vunpack.c.l.b16 %v193
        %v374 = vunpack.c.l.b16 %v194
        %v375 = vunpack.c.l.b16 %v195
        %v376 = vunpack.c.l.b16 %v196
        %v377 = vunpack.c.l.b16 %v197
        %v378 = vunpack.c.l.b16 %v198
        %v379 = vunpack.c.l.b16 %v199
        %v380 = vunpack.c.l.b16 %v200
        %v381 = vunpack.c.l.b16 %v201
        %v382 = vunpack.c.l.b16 %v202
        %v383 = vunpack.c.l.b16 %v203
        %v384 = vunpack.c.l.b16 %v204
        %v385 = vunpack.c.l.b16 %v205
        %v386 = vunpack.c.l.b16 %v206
        %v387 = vunpack.c.l.b16 %v207
        %v388 = vpack.c.b16 %v373, %v372
        %v389 = vpack.c.b16 %v375, %v374
        %v390 = vpack.c.b16 %v377, %v376
        %v391 = vpack.c.b16 %v379, %v378
        %v392 = vpack.c.b16 %v381, %v380
        %v393 = vpack.c.b16 %v383, %v382
        %v394 = vpack.c.b16 %v385, %v384
        %v395 = vpack.c.b16 %v387, %v386
        %v398 = vunpack.c.l.b16 %v208
        %v399 = vunpack.c.l.b16 %v209
        %v400 = vpack.c.b16 %v399, %v398
        %v402 = vsel %vm275, %v388, 0
        %v405 = vsel %vm275, %v389, 0
        %v408 = vsel %vm275, %v390, 0
        %v411 = vsel %vm275, %v391, 0
        %v414 = vsel %vm275, %v392, 0
        %v417 = vsel %vm275, %v393, 0
        %v420 = vsel %vm275, %v394, 0
        %v423 = vsel %vm275, %v395, 0
        %v426 = vand.u32 %v400, %v303
        %428 = vmatpush.bf16.msra.mxu0 0
        %429 = vmatpush.bf16.msra.mxu0 0
        %430 = vmatpush.bf16.msra.mxu0 0
        %431 = vmatpush.bf16.msra.mxu0 0
        %432 = vmatpush.bf16.msra.mxu0 0
        %433 = vmatpush.bf16.msra.mxu0 0
        %434 = vmatpush.bf16.msra.mxu0 0
        %435 = vmatpush.bf16.msra.mxu0 %v426
        %436 = vmatmul.bf16.gmra.mxu0 %v402
        %v437 = vpop.f32.mrf.mxu0
        %v438 = vadd.f32 %v317, %v437
        %v439 = vpop.f32.mrf.mxu0
        %v440 = vadd.f32 %v319, %v439
        %441 = vmatmul.bf16.gmra.mxu0 %v405
        %v442 = vpop.f32.mrf.mxu0
        %v443 = vadd.f32 %v322, %v442
        %v444 = vpop.f32.mrf.mxu0
        %v445 = vadd.f32 %v324, %v444
        %446 = vmatmul.bf16.gmra.mxu0 %v408
        %v447 = vpop.f32.mrf.mxu0
        %v448 = vadd.f32 %v327, %v447
        %v449 = vpop.f32.mrf.mxu0
        %v450 = vadd.f32 %v329, %v449
        %451 = vmatmul.bf16.gmra.mxu0 %v411
        %v452 = vpop.f32.mrf.mxu0
        %v453 = vadd.f32 %v332, %v452
        %v454 = vpop.f32.mrf.mxu0
        %v455 = vadd.f32 %v334, %v454
        %456 = vmatmul.bf16.gmra.mxu0 %v414
        %v457 = vpop.f32.mrf.mxu0
        %v458 = vadd.f32 %v337, %v457
        %v459 = vpop.f32.mrf.mxu0
        %v460 = vadd.f32 %v339, %v459
        %461 = vmatmul.bf16.gmra.mxu0 %v417
        %v462 = vpop.f32.mrf.mxu0
        %v463 = vadd.f32 %v342, %v462
        %v464 = vpop.f32.mrf.mxu0
        %v465 = vadd.f32 %v344, %v464
        %466 = vmatmul.bf16.gmra.mxu0 %v420
        %v467 = vpop.f32.mrf.mxu0
        %v468 = vadd.f32 %v347, %v467
        %v469 = vpop.f32.mrf.mxu0
        %v470 = vadd.f32 %v349, %v469
        %471 = vmatmul.bf16.gmra.mxu0 %v423
        %v472 = vpop.f32.mrf.mxu0
        %v473 = vadd.f32 %v352, %v472
        %v474 = vpop.f32.mrf.mxu0
        %v475 = vadd.f32 %v354, %v474
        %476 = vdwg.mxu0
        %s477 = scalar_lea.vmem %s188, 16
        %v478 = vld [vmem:[%s477] sm:$0xf]
        %v479 = vld [vmem:[%s477 + $0x4] sm:$0xf]
        %v480 = vld [vmem:[%s477 + $0x8] sm:$0xf]
        %v481 = vld [vmem:[%s477 + $0xc] sm:$0xf]
        %v482 = vld [vmem:[%s477 + $0x10] sm:$0xf]
        %v483 = vld [vmem:[%s477 + $0x14] sm:$0xf]
        %v484 = vld [vmem:[%s477 + $0x18] sm:$0xf]
        %v485 = vld [vmem:[%s477 + $0x1c] sm:$0xf]
        %v486 = vld [vmem:[%s477 + $0x20] sm:$0xf]
        %v487 = vld [vmem:[%s477 + $0x24] sm:$0xf]
        %v488 = vld [vmem:[%s477 + $0x28] sm:$0xf]
        %v489 = vld [vmem:[%s477 + $0x2c] sm:$0xf]
        %v490 = vld [vmem:[%s477 + $0x30] sm:$0xf]
        %v491 = vld [vmem:[%s477 + $0x34] sm:$0xf]
        %v492 = vld [vmem:[%s477 + $0x38] sm:$0xf]
        %v493 = vld [vmem:[%s477 + $0x3c] sm:$0xf]
        %s494 = scalar_lea.vmem %s1, 16
        %v495 = vld [vmem:[%s494] sm:$0xf]
        %v496 = vld [vmem:[%s494 + $0x4] sm:$0xf]
        %v513 = vunpack.c.l.b16 %v478
        %v514 = vunpack.c.l.b16 %v479
        %v515 = vunpack.c.l.b16 %v480
        %v516 = vunpack.c.l.b16 %v481
        %v517 = vunpack.c.l.b16 %v482
        %v518 = vunpack.c.l.b16 %v483
        %v519 = vunpack.c.l.b16 %v484
        %v520 = vunpack.c.l.b16 %v485
        %v521 = vunpack.c.l.b16 %v486
        %v522 = vunpack.c.l.b16 %v487
        %v523 = vunpack.c.l.b16 %v488
        %v524 = vunpack.c.l.b16 %v489
        %v525 = vunpack.c.l.b16 %v490
        %v526 = vunpack.c.l.b16 %v491
        %v527 = vunpack.c.l.b16 %v492
        %v528 = vunpack.c.l.b16 %v493
        %v529 = vpack.c.b16 %v514, %v513
        %v530 = vpack.c.b16 %v516, %v515
        %v531 = vpack.c.b16 %v518, %v517
        %v532 = vpack.c.b16 %v520, %v519
        %v533 = vpack.c.b16 %v522, %v521
        %v534 = vpack.c.b16 %v524, %v523
        %v535 = vpack.c.b16 %v526, %v525
        %v536 = vpack.c.b16 %v528, %v527
        %v539 = vunpack.c.l.b16 %v495
        %v540 = vunpack.c.l.b16 %v496
        %v541 = vpack.c.b16 %v540, %v539
        %v543 = vsel %vm275, %v529, 0
        %v546 = vsel %vm275, %v530, 0
        %v549 = vsel %vm275, %v531, 0
        %v552 = vsel %vm275, %v532, 0
        %v555 = vsel %vm275, %v533, 0
        %v558 = vsel %vm275, %v534, 0
        %v561 = vsel %vm275, %v535, 0
        %v564 = vsel %vm275, %v536, 0
        %v567 = vand.u32 %v541, %v303
        %569 = vmatpush.bf16.msra.mxu0 0
        %570 = vmatpush.bf16.msra.mxu0 0
        %571 = vmatpush.bf16.msra.mxu0 0
        %572 = vmatpush.bf16.msra.mxu0 0
        %573 = vmatpush.bf16.msra.mxu0 0
        %574 = vmatpush.bf16.msra.mxu0 0
        %575 = vmatpush.bf16.msra.mxu0 0
        %576 = vmatpush.bf16.msra.mxu0 %v567
        %577 = vmatmul.bf16.gmra.mxu0 %v543
        %v578 = vpop.f32.mrf.mxu0
        %v579 = vadd.f32 0.0, %v578
        %v580 = vpop.f32.mrf.mxu0
        %v581 = vadd.f32 0.0, %v580
        %582 = vmatmul.bf16.gmra.mxu0 %v546
        %v583 = vpop.f32.mrf.mxu0
        %v584 = vadd.f32 0.0, %v583
        %v585 = vpop.f32.mrf.mxu0
        %v586 = vadd.f32 0.0, %v585
        %587 = vmatmul.bf16.gmra.mxu0 %v549
        %v588 = vpop.f32.mrf.mxu0
        %v589 = vadd.f32 0.0, %v588
        %v590 = vpop.f32.mrf.mxu0
        %v591 = vadd.f32 0.0, %v590
        %592 = vmatmul.bf16.gmra.mxu0 %v552
        %v593 = vpop.f32.mrf.mxu0
        %v594 = vadd.f32 0.0, %v593
        %v595 = vpop.f32.mrf.mxu0
        %v596 = vadd.f32 0.0, %v595
        %597 = vmatmul.bf16.gmra.mxu0 %v555
        %v598 = vpop.f32.mrf.mxu0
        %v599 = vadd.f32 0.0, %v598
        %v600 = vpop.f32.mrf.mxu0
        %v601 = vadd.f32 0.0, %v600
        %602 = vmatmul.bf16.gmra.mxu0 %v558
        %v603 = vpop.f32.mrf.mxu0
        %v604 = vadd.f32 0.0, %v603
        %v605 = vpop.f32.mrf.mxu0
        %v606 = vadd.f32 0.0, %v605
        %607 = vmatmul.bf16.gmra.mxu0 %v561
        %v608 = vpop.f32.mrf.mxu0
        %v609 = vadd.f32 0.0, %v608
        %v610 = vpop.f32.mrf.mxu0
        %v611 = vadd.f32 0.0, %v610
        %612 = vmatmul.bf16.gmra.mxu0 %v564
        %v613 = vpop.f32.mrf.mxu0
        %v614 = vadd.f32 0.0, %v613
        %v615 = vpop.f32.mrf.mxu0
        %v616 = vadd.f32 0.0, %v615
        %617 = vdwg.mxu0
        %v618 = vadd.f32 %v438, %v579
        %v619 = vadd.f32 %v440, %v581
        %v620 = vadd.f32 %v443, %v584
        %v621 = vadd.f32 %v445, %v586
        %v622 = vadd.f32 %v448, %v589
        %v623 = vadd.f32 %v450, %v591
        %v624 = vadd.f32 %v453, %v594
        %v625 = vadd.f32 %v455, %v596
        %v626 = vadd.f32 %v458, %v599
        %v627 = vadd.f32 %v460, %v601
        %v628 = vadd.f32 %v463, %v604
        %v629 = vadd.f32 %v465, %v606
        %v630 = vadd.f32 %v468, %v609
        %v631 = vadd.f32 %v470, %v611
        %v632 = vadd.f32 %v473, %v614
        %v633 = vadd.f32 %v475, %v616
        %v634 = vld [vmem:[%s2] sm:$0x1]
        %v636 = vperm.slane %v634, 0
        %v638 = vadd.f32 %v618, %v636
        %v639 = vadd.f32 %v619, %v636
        %v640 = vadd.f32 %v620, %v636
        %v641 = vadd.f32 %v621, %v636
        %v642 = vadd.f32 %v622, %v636
        %v643 = vadd.f32 %v623, %v636
        %v644 = vadd.f32 %v624, %v636
        %v645 = vadd.f32 %v625, %v636
        %v646 = vadd.f32 %v626, %v636
        %v647 = vadd.f32 %v627, %v636
        %v648 = vadd.f32 %v628, %v636
        %v649 = vadd.f32 %v629, %v636
        %v650 = vadd.f32 %v630, %v636
        %v651 = vadd.f32 %v631, %v636
        %v652 = vadd.f32 %v632, %v636
        %v653 = vadd.f32 %v633, %v636
        %654 = vst [vmem:[%s182] sm:$0xff] %v638
        %655 = vst [vmem:[%s182 + $0x8] sm:$0xff] %v639
        %656 = vst [vmem:[%s182 + $0x10] sm:$0xff] %v640
        %657 = vst [vmem:[%s182 + $0x18] sm:$0xff] %v641
        %658 = vst [vmem:[%s182 + $0x20] sm:$0xff] %v642
        %659 = vst [vmem:[%s182 + $0x28] sm:$0xff] %v643
        %660 = vst [vmem:[%s182 + $0x30] sm:$0xff] %v644
        %661 = vst [vmem:[%s182 + $0x38] sm:$0xff] %v645
        %662 = vst [vmem:[%s182 + $0x40] sm:$0xff] %v646
        %663 = vst [vmem:[%s182 + $0x48] sm:$0xff] %v647
        %664 = vst [vmem:[%s182 + $0x50] sm:$0xff] %v648
        %665 = vst [vmem:[%s182 + $0x58] sm:$0xff] %v649
        %666 = vst [vmem:[%s182 + $0x60] sm:$0xff] %v650
        %667 = vst [vmem:[%s182 + $0x68] sm:$0xff] %v651
        %668 = vst [vmem:[%s182 + $0x70] sm:$0xff] %v652
        %669 = vst [vmem:[%s182 + $0x78] sm:$0xff] %v653
        %s670 = sand.u32 %s109, 1
        %s671 = scalar_lea.sflag [#allocation3], %s670
        %s672 = sand.u32 %s109, 1
        %s673 = smul.addr %s672, 128
        %s674 = scalar_lea.vmem [#allocation2], %s673
        // Predicated region
        $region33: #{tpu_custom_call.1} parent=31 // pred_check
          %p675 = pneg %p119
        $region34: #{tpu_custom_call.1} parent=31 // pred_check_branch
          %677 = sbr.rel (%p675) target = $region36
        $region35: #{tpu_custom_call.1} parent=31 // pred_region
          %s678 = smul.u32 8, %s22
          %680 = vsyncadd %s671, 0
          %s681 = smul.addr %s678, 2
          %s682 = smul.addr %s21, 16
          %s683 = sadd.s32 %s681, %s682
          %s684 = smul.addr %s683, 8
          %s685 = scalar_lea.hbm %s3, %s684
          %s686 = sshll.u32 %s674, 4
          %s687 = int_to_ptr.vmem [resolvable:$true] %s686
          %s688 = sshll.u32 %s685, 4
          %s689 = int_to_ptr.hbm [resolvable:$true] %s688
          %694 = dma.vmem_to_hbm [thread:$0]  %s687, 2048, %s689, %s671, 128, 128, 8
        $region36: #{tpu_custom_call.1} parent=31 // pred_fallthru
          _
      $region32: #{tpu_custom_call.1} parent=5 // pred_fallthru
        _
      %p695 = scmp.le.s32.totalorder 2, %s12
      // Predicated region
      $region37: #{tpu_custom_call.1} parent=5 // pred_check
        %p696 = pneg %p695
      $region38: #{tpu_custom_call.1} parent=5 // pred_check_branch
        %698 = sbr.rel (%p696) target = $region40
      $region39: #{tpu_custom_call.1} parent=5 // pred_region
        %s699 = ssub.s32 %s12, 2
        // Predicated region
        $region41: #{tpu_custom_call.1} parent=39 // pred_check
          %p700 = pneg %p125
        $region42: #{tpu_custom_call.1} parent=39 // pred_check_branch
          %702 = sbr.rel (%p700) target = $region44
        $region43: #{tpu_custom_call.1} parent=39 // pred_region
          %s703 = sand.u32 %s110, 1
          %s704 = scalar_lea.sflag [#allocation3], %s703
          %s705 = sand.u32 %s110, 1
          %s706 = smul.addr %s705, 128
          %s707 = scalar_lea.vmem [#allocation2], %s706
          %709 = dma.done %s704, 2048
        $region44: #{tpu_custom_call.1} parent=39 // pred_fallthru
          _
      $region40: #{tpu_custom_call.1} parent=5 // pred_fallthru
        _
    $region6: #{tpu_custom_call.1} parent=1 // loop_footer
      %s16 = sadd.s32 1, %s12
    $region7: #{tpu_custom_call.1} parent=1 // loop_footer_branch
      %11 = sbr.rel target = $region3
    $region8: #{tpu_custom_call.1} parent=1 // loop_exit
      _
    %710 = vsyncpa [#allocation3], 1
    %s711 = scalar_lea.sflag [#allocation3], 1
    %712 = vsyncpa %s711, 1

</llo_original>
